<compile_context>
chip_gen: v7x
topology: tpu7x:2x2x1
jax: 0.10.0
libtpu: 0.0.40
codegen_flags: <defaults>
</compile_context>

<pallas_src>
import jax
import jax.numpy as jnp
from jax import lax
from jax.experimental import pallas as pl
from jax.experimental.pallas import tpu as pltpu

LANES = 128
TARGET_TILE_BYTES = 4 << 20  # per input, per pipeline buffer (tunable)


def _make_iou_sums_kernel(tile_rows, last_valid_rows, needs_mask, use_group_fold):
    """Build the reduction kernel with static tile geometry baked in.

    tile_rows       : rows per block (static)
    last_valid_rows : valid rows in the final (possibly overhanging) block
    needs_mask      : whether the final block overhangs the array
    use_group_fold  : tile_rows % 8 == 0 -> fold into (8,128) vreg accumulators
    """
    groups = tile_rows // 8 if use_group_fold else 0

    def kernel(m_ref, g_ref, o_ref, acc_i, acc_m, acc_g):
        i = pl.program_id(0)
        last = pl.num_programs(0) - 1

        if not use_group_fold:
            # Tiny single-step case (grid == 1, block == full array): direct
            # reduce, accumulators unused.
            m = m_ref[...].astype(jnp.float32)
            g = g_ref[...].astype(jnp.float32)
            o_ref[0] = jnp.sum(m * g)
            o_ref[1] = jnp.sum(m)
            o_ref[2] = jnp.sum(g)
            return

        @pl.when(i == 0)
        def _init():
            acc_i[...] = jnp.zeros_like(acc_i)
            acc_m[...] = jnp.zeros_like(acc_m)
            acc_g[...] = jnp.zeros_like(acc_g)

        def accumulate(masked):
            m = m_ref[...].astype(jnp.float32)
            g = g_ref[...].astype(jnp.float32)
            if masked:
                # Mask BEFORE any arithmetic: the overhanging region of the
                # last block is undefined (could be NaN for float inputs).
                row_ids = lax.broadcasted_iota(
                    jnp.int32, (tile_rows, LANES), 0)
                valid = row_ids < last_valid_rows
                m = jnp.where(valid, m, 0.0)
                g = jnp.where(valid, g, 0.0)
            # Sublane-group fold: (tr,128) -> (tr//8, 8, 128), sum over the
            # leading (untiled) axis == straight vreg adds into one vreg.
            acc_i[...] += jnp.sum((m * g).reshape(groups, 8, LANES), axis=0)
            acc_m[...] += jnp.sum(m.reshape(groups, 8, LANES), axis=0)
            acc_g[...] += jnp.sum(g.reshape(groups, 8, LANES), axis=0)

        if needs_mask:
            @pl.when(i != last)
            def _fast():
                accumulate(False)

            @pl.when(i == last)
            def _masked():
                accumulate(True)
        else:
            accumulate(False)

        @pl.when(i == last)
        def _finalize():
            # Single cross-lane/sublane reduce at the very end.
            o_ref[0] = jnp.sum(acc_i[...])
            o_ref[1] = jnp.sum(acc_m[...])
            o_ref[2] = jnp.sum(acc_g[...])

    return kernel


def reward_model_iou(mask, ground_truth, *, target_tile_bytes=TARGET_TILE_BYTES):
    """IoU reward. mask / ground_truth: any matching shape (e.g. NCHW)."""
    assert mask.shape == ground_truth.shape
    m = mask.reshape(-1)
    g = ground_truth.reshape(-1)
    # bool has no clean VMEM layout; widen minimally (kernel casts to f32 in
    # VMEM, so narrow mask dtypes keep HBM traffic low).
    if m.dtype == jnp.bool_:
        m = m.astype(jnp.uint8)
    if g.dtype == jnp.bool_:
        g = g.astype(jnp.uint8)

    n = m.shape[0]
    rows = n // LANES
    tail = n - rows * LANES

    inter = jnp.float32(0.0)
    sum_m = jnp.float32(0.0)
    sum_g = jnp.float32(0.0)

    if rows > 0:
        # Free reshape when n % 128 == 0 (common case); otherwise slices off
        # the <128-element lane tail which is handled below.
        m2 = m[: rows * LANES].reshape(rows, LANES)
        g2 = g[: rows * LANES].reshape(rows, LANES)

        m_item = m2.dtype.itemsize
        g_item = g2.dtype.itemsize
        # Packed sublane multiple: 8 (4B), 16 (2B), 32 (1B). Use the stricter
        # of the two input dtypes.
        sub_mult = 32 // min(m_item, g_item)
        budget_rows = target_tile_bytes // (LANES * max(m_item, g_item))
        budget_rows = max(sub_mult, (budget_rows // sub_mult) * sub_mult)

        if rows <= budget_rows:
            tr = rows          # single step; block == full array (always legal)
        else:
            tr = budget_rows   # multiple of sub_mult -> clean tiling
        grid = pl.cdiv(rows, tr)
        needs_mask = (rows % tr) != 0
        last_valid = rows - (grid - 1) * tr
        use_group_fold = (tr % 8 == 0)
        if not use_group_fold:
            assert grid == 1 and not needs_mask

        kernel = _make_iou_sums_kernel(tr, last_valid, needs_mask,
                                       use_group_fold)

        # 2 pipeline buffers per input + three (8,128) f32 accumulators.
        stream_bytes = 2 * tr * LANES * (m_item + g_item)
        vmem_limit = stream_bytes + 3 * 8 * LANES * 4 + (4 << 20)
        vmem_limit = int(min(max(vmem_limit, 16 << 20), 40 << 20))

        cost = pl.CostEstimate(
            flops=4 * rows * LANES,              # mul + 3 adds per element
            transcendentals=0,
            bytes_accessed=rows * LANES * (m_item + g_item) + 12,
        )

        sums = pl.pallas_call(
            kernel,
            out_shape=jax.ShapeDtypeStruct((3,), jnp.float32),
            grid_spec=pltpu.PrefetchScalarGridSpec(
                num_scalar_prefetch=0,
                grid=(grid,),
                in_specs=[
                    pl.BlockSpec((tr, LANES), lambda i: (i, 0)),
                    pl.BlockSpec((tr, LANES), lambda i: (i, 0)),
                ],
                out_specs=pl.BlockSpec(memory_space=pltpu.SMEM),
                scratch_shapes=[pltpu.VMEM((8, LANES), jnp.float32)] * 3,
            ),
            compiler_params=pltpu.CompilerParams(
                dimension_semantics=("arbitrary",),
                vmem_limit_bytes=vmem_limit,
            ),
            cost_estimate=cost,
        )(m2, g2)

        inter = inter + sums[0]
        sum_m = sum_m + sums[1]
        sum_g = sum_g + sums[2]

    if tail > 0:
        # Ragged lane tail (< 128 elements): tiny jnp reduction.
        tm = m[rows * LANES:].astype(jnp.float32)
        tg = g[rows * LANES:].astype(jnp.float32)
        inter = inter + jnp.sum(tm * tg)
        sum_m = sum_m + jnp.sum(tm)
        sum_g = sum_g + jnp.sum(tg)

    union = sum_m + sum_g - inter
    return (inter + 1e-07) / (union + 1e-07)


def _reference_iou(mask, ground_truth):
    mask = mask.astype(jnp.float32)
    ground_truth = ground_truth.astype(jnp.float32)
    inter = jnp.sum(mask * ground_truth)
    union = jnp.sum(mask) + jnp.sum(ground_truth) - inter
    return (inter + 1e-07) / (union + 1e-07)


if __name__ == "__main__":
    key = jax.random.PRNGKey(0)
    k1, k2, k3, k4 = jax.random.split(key, 4)

    # Small NCHW-like inputs: batch=2, channels=4, spatial=16x16.
    mask = (jax.random.uniform(k1, (2, 4, 16, 16)) > 0.5).astype(jnp.float32)
    gt = (jax.random.uniform(k2, (2, 4, 16, 16)) > 0.5).astype(jnp.float32)

    iou = jax.block_until_ready(reward_model_iou(mask, gt))
    ref = _reference_iou(mask, gt)
    assert jnp.allclose(iou, ref, rtol=1e-5, atol=1e-6), (iou, ref)

    # Exercise the multi-step + masked-last-tile + lane-tail path with a tiny
    # synthetic tile budget (8 KiB -> 16-row tiles) on a ragged shape.
    mask2 = (jax.random.uniform(k3, (3, 5, 37, 29)) > 0.5).astype(jnp.float32)
    gt2 = (jax.random.uniform(k4, (3, 5, 37, 29)) > 0.5).astype(jnp.float32)
    iou2 = jax.block_until_ready(
        reward_model_iou(mask2, gt2, target_tile_bytes=8 * 1024))
    ref2 = _reference_iou(mask2, gt2)
    assert jnp.allclose(iou2, ref2, rtol=1e-5, atol=1e-6), (iou2, ref2)

    print("KERNEL_OK")
</pallas_src>

<mosaic_0001>
module attributes {stable_mosaic.version = 11 : i64} {
  func.func @kernel(%arg0: i32, %arg1: memref<16x128xf32, #tpu.memory_space<vmem>>, %arg2: memref<16x128xf32, #tpu.memory_space<vmem>>, %arg3: memref<3xf32, #tpu.memory_space<smem>>, %arg4: memref<8x128xf32, #tpu.memory_space<vmem>>, %arg5: memref<8x128xf32, #tpu.memory_space<vmem>>, %arg6: memref<8x128xf32, #tpu.memory_space<vmem>>) attributes {dimension_semantics = [#tpu.dimension_semantics<arbitrary>], iteration_bounds = array<i64: 1>, scalar_prefetch = 0 : i64, scratch_operands = 3 : i64, tpu.core_type = #tpu.core_type<tc>, window_params = [{transform_indices = @transform_0, window_bounds = array<i64: 16, 128>}, {transform_indices = @transform_1, window_bounds = array<i64: 16, 128>}, {transform_indices = @transform_2, window_bounds = array<i64: 3>}]} {
    %c0_i32 = arith.constant 0 : i32
    %0 = arith.cmpi eq, %arg0, %c0_i32 : i32
    %1 = arith.extui %0 : i1 to i32
    %c0_i32_0 = arith.constant 0 : i32
    %2 = arith.cmpi ne, %1, %c0_i32_0 : i32
    scf.if %2 {
      %cst_20 = arith.constant 0.000000e+00 : f32
      %24 = vector.broadcast %cst_20 : f32 to vector<8x128xf32>
      %c0_21 = arith.constant 0 : index
      %c0_22 = arith.constant 0 : index
      %25 = vector.load %arg4[%c0_21, %c0_22] : memref<8x128xf32, #tpu.memory_space<vmem>>, vector<8x128xf32>
      tpu.vector_store %arg4[%c0_21, %c0_22], %24 {strides = array<i32>} : memref<8x128xf32, #tpu.memory_space<vmem>>, vector<8x128xf32>,
      %cst_23 = arith.constant 0.000000e+00 : f32
      %26 = vector.broadcast %cst_23 : f32 to vector<8x128xf32>
      %c0_24 = arith.constant 0 : index
      %c0_25 = arith.constant 0 : index
      %27 = vector.load %arg5[%c0_24, %c0_25] : memref<8x128xf32, #tpu.memory_space<vmem>>, vector<8x128xf32>
      tpu.vector_store %arg5[%c0_24, %c0_25], %26 {strides = array<i32>} : memref<8x128xf32, #tpu.memory_space<vmem>>, vector<8x128xf32>,
      %cst_26 = arith.constant 0.000000e+00 : f32
      %28 = vector.broadcast %cst_26 : f32 to vector<8x128xf32>
      %c0_27 = arith.constant 0 : index
      %c0_28 = arith.constant 0 : index
      %29 = vector.load %arg6[%c0_27, %c0_28] : memref<8x128xf32, #tpu.memory_space<vmem>>, vector<8x128xf32>
      tpu.vector_store %arg6[%c0_27, %c0_28], %28 {strides = array<i32>} : memref<8x128xf32, #tpu.memory_space<vmem>>, vector<8x128xf32>,
    } else {
    }
    %c0 = arith.constant 0 : index
    %c0_1 = arith.constant 0 : index
    %3 = vector.load %arg1[%c0, %c0_1] : memref<16x128xf32, #tpu.memory_space<vmem>>, vector<16x128xf32>
    %c0_2 = arith.constant 0 : index
    %c0_3 = arith.constant 0 : index
    %4 = vector.load %arg2[%c0_2, %c0_3] : memref<16x128xf32, #tpu.memory_space<vmem>>, vector<16x128xf32>
    %c0_4 = arith.constant 0 : index
    %c0_5 = arith.constant 0 : index
    %5 = vector.load %arg4[%c0_4, %c0_5] : memref<8x128xf32, #tpu.memory_space<vmem>>, vector<8x128xf32>
    %6 = arith.mulf %3, %4 : vector<16x128xf32>
    %7 = vector.shape_cast %6 : vector<16x128xf32> to vector<2x8x128xf32>
    %cst = arith.constant dense<0.000000e+00> : vector<8x128xf32>
    %8 = vector.multi_reduction <add>, %7, %cst [0] : vector<2x8x128xf32> to vector<8x128xf32>
    %9 = arith.addf %5, %8 : vector<8x128xf32>
    %c0_6 = arith.constant 0 : index
    %c0_7 = arith.constant 0 : index
    %10 = vector.load %arg4[%c0_6, %c0_7] : memref<8x128xf32, #tpu.memory_space<vmem>>, vector<8x128xf32>
    tpu.vector_store %arg4[%c0_6, %c0_7], %9 {strides = array<i32>} : memref<8x128xf32, #tpu.memory_space<vmem>>, vector<8x128xf32>,
    %c0_8 = arith.constant 0 : index
    %c0_9 = arith.constant 0 : index
    %11 = vector.load %arg5[%c0_8, %c0_9] : memref<8x128xf32, #tpu.memory_space<vmem>>, vector<8x128xf32>
    %12 = vector.shape_cast %3 : vector<16x128xf32> to vector<2x8x128xf32>
    %cst_10 = arith.constant dense<0.000000e+00> : vector<8x128xf32>
    %13 = vector.multi_reduction <add>, %12, %cst_10 [0] : vector<2x8x128xf32> to vector<8x128xf32>
    %14 = arith.addf %11, %13 : vector<8x128xf32>
    %c0_11 = arith.constant 0 : index
    %c0_12 = arith.constant 0 : index
    %15 = vector.load %arg5[%c0_11, %c0_12] : memref<8x128xf32, #tpu.memory_space<vmem>>, vector<8x128xf32>
    tpu.vector_store %arg5[%c0_11, %c0_12], %14 {strides = array<i32>} : memref<8x128xf32, #tpu.memory_space<vmem>>, vector<8x128xf32>,
    %c0_13 = arith.constant 0 : index
    %c0_14 = arith.constant 0 : index
    %16 = vector.load %arg6[%c0_13, %c0_14] : memref<8x128xf32, #tpu.memory_space<vmem>>, vector<8x128xf32>
    %17 = vector.shape_cast %4 : vector<16x128xf32> to vector<2x8x128xf32>
    %cst_15 = arith.constant dense<0.000000e+00> : vector<8x128xf32>
    %18 = vector.multi_reduction <add>, %17, %cst_15 [0] : vector<2x8x128xf32> to vector<8x128xf32>
    %19 = arith.addf %16, %18 : vector<8x128xf32>
    %c0_16 = arith.constant 0 : index
    %c0_17 = arith.constant 0 : index
    %20 = vector.load %arg6[%c0_16, %c0_17] : memref<8x128xf32, #tpu.memory_space<vmem>>, vector<8x128xf32>
    tpu.vector_store %arg6[%c0_16, %c0_17], %19 {strides = array<i32>} : memref<8x128xf32, #tpu.memory_space<vmem>>, vector<8x128xf32>,
    %c0_i32_18 = arith.constant 0 : i32
    %21 = arith.cmpi eq, %arg0, %c0_i32_18 : i32
    %22 = arith.extui %21 : i1 to i32
    %c0_i32_19 = arith.constant 0 : i32
    %23 = arith.cmpi ne, %22, %c0_i32_19 : i32
    scf.if %23 {
      %c0_20 = arith.constant 0 : index
      %c0_21 = arith.constant 0 : index
      %24 = vector.load %arg4[%c0_20, %c0_21] : memref<8x128xf32, #tpu.memory_space<vmem>>, vector<8x128xf32>
      %25 = vector.shape_cast %24 : vector<8x128xf32> to vector<1x8x128xf32>
      %cst_22 = arith.constant dense<0.000000e+00> : vector<1xf32>
      %26 = vector.multi_reduction <add>, %25, %cst_22 [1, 2] : vector<1x8x128xf32> to vector<1xf32>
      %27 = vector.shape_cast %26 : vector<1xf32> to vector<1x1x1xf32>
      %28 = vector.extract %27[0, 0, 0] : f32 from vector<1x1x1xf32>
      %c0_23 = arith.constant 0 : index
      %29 = memref.load %arg3[%c0_23] : memref<3xf32, #tpu.memory_space<smem>>
      memref.store %28, %arg3[%c0_23] : memref<3xf32, #tpu.memory_space<smem>>
      %c0_24 = arith.constant 0 : index
      %c0_25 = arith.constant 0 : index
      %30 = vector.load %arg5[%c0_24, %c0_25] : memref<8x128xf32, #tpu.memory_space<vmem>>, vector<8x128xf32>
      %31 = vector.shape_cast %30 : vector<8x128xf32> to vector<1x8x128xf32>
      %cst_26 = arith.constant dense<0.000000e+00> : vector<1xf32>
      %32 = vector.multi_reduction <add>, %31, %cst_26 [1, 2] : vector<1x8x128xf32> to vector<1xf32>
      %33 = vector.shape_cast %32 : vector<1xf32> to vector<1x1x1xf32>
      %34 = vector.extract %33[0, 0, 0] : f32 from vector<1x1x1xf32>
      %c1 = arith.constant 1 : index
      %35 = memref.load %arg3[%c1] : memref<3xf32, #tpu.memory_space<smem>>
      memref.store %34, %arg3[%c1] : memref<3xf32, #tpu.memory_space<smem>>
      %c0_27 = arith.constant 0 : index
      %c0_28 = arith.constant 0 : index
      %36 = vector.load %arg6[%c0_27, %c0_28] : memref<8x128xf32, #tpu.memory_space<vmem>>, vector<8x128xf32>
      %37 = vector.shape_cast %36 : vector<8x128xf32> to vector<1x8x128xf32>
      %cst_29 = arith.constant dense<0.000000e+00> : vector<1xf32>
      %38 = vector.multi_reduction <add>, %37, %cst_29 [1, 2] : vector<1x8x128xf32> to vector<1xf32>
      %39 = vector.shape_cast %38 : vector<1xf32> to vector<1x1x1xf32>
      %40 = vector.extract %39[0, 0, 0] : f32 from vector<1x1x1xf32>
      %c2 = arith.constant 2 : index
      %41 = memref.load %arg3[%c2] : memref<3xf32, #tpu.memory_space<smem>>
      memref.store %40, %arg3[%c2] : memref<3xf32, #tpu.memory_space<smem>>
    } else {
    }
    return
  }
  func.func @transform_0(%arg0: i32) -> (i32, i32) {
    %c0_i32 = arith.constant 0 : i32
    %c0_i32_0 = arith.constant 0 : i32
    return %arg0, %c0_i32 : i32, i32
  }
  func.func @transform_1(%arg0: i32) -> (i32, i32) {
    %c0_i32 = arith.constant 0 : i32
    %c0_i32_0 = arith.constant 0 : i32
    return %arg0, %c0_i32 : i32, i32
  }
  func.func @transform_2(%arg0: i32) -> i32 {
    %c0_i32 = arith.constant 0 : i32
    %c0_i32_0 = arith.constant 0 : i32
    return %c0_i32 : i32
  }
}

</mosaic_0001>

<llo_original>
// kernel: tpu_custom_call.1
$region0: #{tpu_custom_call.1}
  #allocation0 [shape = 'u32[]', space=smem, size = 0x4, offset = 0x4, fixed_abs, tag = 'smem constant byte address 0x4 - core index']
  #allocation1 [shape = 'u32[144,128]{1,0:T(1,128)}', space=vmem, size = 0x12000, scoped, tag = 'internal scratch']
  #allocation2 [shape = 'f32[8,128]{1,0:T(8,128)}', space=vmem, size = 0x1000, scoped, tag = 'scratch operand']
  #allocation3 [shape = 'f32[8,128]{1,0:T(8,128)}', space=vmem, size = 0x1000, scoped, tag = 'scratch operand']
  #allocation4 [shape = 'f32[8,128]{1,0:T(8,128)}', space=vmem, size = 0x1000, scoped, tag = 'scratch operand']
  %s0 = inlined_call_operand.hbm [shape: f32[16,128], index: 0, kind: input, shape index: {}]
  %s1 = inlined_call_operand.hbm [shape: f32[16,128], index: 1, kind: input, shape index: {}]
  %s2 = inlined_call_operand.hbm [shape: f32[3], index: 2, kind: output, shape index: {}]
  %s3 = sld [smem:[#allocation0]]
  $region34: #{tpu_custom_call.1} parent=0
    _
  %s5 = ssub.s32 1, %s3
  %s6 = scalar_select 0, %s5, %s3
  $region1: #{tpu_custom_call.1} parent=0
    #allocation5 [shape = 'u8[8192]{0}', space=vmem, size = 0x2000, scoped, tag = 'input window, operand 0, single buffered']
    #allocation6 [shape = 's32[1]{0}', space=sflag, size = 0x4, scoped, tag = 'scoped memory for tpu_custom_call.1']
    #allocation7 [shape = 's32[1]{0}', space=sflag, size = 0x4, scoped, tag = 'scoped memory for tpu_custom_call.1']
    #allocation8 [shape = 'u8[8192]{0}', space=vmem, size = 0x2000, scoped, tag = 'input window, operand 1, single buffered']
    #allocation9 [shape = 's32[1]{0}', space=sflag, size = 0x4, scoped, tag = 'scoped memory for tpu_custom_call.1']
    #allocation10 [shape = 'u8[512]{0}', space=smem, size = 0x200, scoped, tag = 'output window, operand 0, single buffered']
    %7 = vsyncpa [#allocation6], 0
    %8 = vsyncpa [#allocation9], 0
    %9 = vsyncpa [#allocation7], 0
    // Predicated region
    $region2: #{tpu_custom_call.1} parent=1 // pred_check
      _
    $region3: #{tpu_custom_call.1} parent=1 // pred_check_branch
      %11 = sbr.rel (0) target = $region5
    $region4: #{tpu_custom_call.1} parent=1 // pred_region
      %s13 = ssub.s32 256, 256
      %14 = vsyncadd [#allocation6], %s13
      %s15 = sshll.u32 [#allocation5], 4
      %s16 = int_to_ptr.vmem [resolvable:$true] %s15
      %21 = dma.hbm_to_vmem [thread:$0]  %s0, 256, %s16, [#allocation6], 128, 128, 8
    $region5: #{tpu_custom_call.1} parent=1 // pred_fallthru
      _
    // Predicated region
    $region6: #{tpu_custom_call.1} parent=1 // pred_check
      _
    $region7: #{tpu_custom_call.1} parent=1 // pred_check_branch
      %23 = sbr.rel (0) target = $region9
    $region8: #{tpu_custom_call.1} parent=1 // pred_region
      %s25 = ssub.s32 256, 256
      %26 = vsyncadd [#allocation9], %s25
      %s27 = sshll.u32 [#allocation8], 4
      %s28 = int_to_ptr.vmem [resolvable:$true] %s27
      %33 = dma.hbm_to_vmem [thread:$0]  %s1, 256, %s28, [#allocation9], 128, 128, 8
    $region9: #{tpu_custom_call.1} parent=1 // pred_fallthru
      _
    // Predicated region
    $region10: #{tpu_custom_call.1} parent=1 // pred_check
      _
    $region11: #{tpu_custom_call.1} parent=1 // pred_check_branch
      %35 = sbr.rel (0) target = $region13
    $region12: #{tpu_custom_call.1} parent=1 // pred_region
      %36 = dma.done [#allocation6], 256
    $region13: #{tpu_custom_call.1} parent=1 // pred_fallthru
      _
    // Predicated region
    $region14: #{tpu_custom_call.1} parent=1 // pred_check
      _
    $region15: #{tpu_custom_call.1} parent=1 // pred_check_branch
      %38 = sbr.rel (0) target = $region17
    $region16: #{tpu_custom_call.1} parent=1 // pred_region
      %39 = dma.done [#allocation9], 256
    $region17: #{tpu_custom_call.1} parent=1 // pred_fallthru
      _
    %p40 = scmp.eq.s32.totalorder 0, 0
    // Predicated region
    $region18: #{tpu_custom_call.1} parent=1 // pred_check
      %p41 = pneg %p40
    $region19: #{tpu_custom_call.1} parent=1 // pred_check_branch
      %43 = sbr.rel (%p41) target = $region21
    $region20: #{tpu_custom_call.1} parent=1 // pred_region
      %44 = vst [vmem:[#allocation2] sm:$0xff] 0.0
      %45 = vst [vmem:[#allocation3] sm:$0xff] 0.0
      %46 = vst [vmem:[#allocation4] sm:$0xff] 0.0
    $region21: #{tpu_custom_call.1} parent=1 // pred_fallthru
      _
    %v47 = vld [vmem:[#allocation5] sm:$0xff]
    %v48 = vld [vmem:[#allocation5 + $0x8] sm:$0xff]
    %v49 = vld [vmem:[#allocation8] sm:$0xff]
    %v50 = vld [vmem:[#allocation8 + $0x8] sm:$0xff]
    %v51 = vld [vmem:[#allocation2] sm:$0xff]
    %v52 = vmul.f32 %v47, %v49
    %v53 = vmul.f32 %v48, %v50
    %v54 = vadd.f32 %v52, %v53
    %v55 = vadd.f32 %v51, %v54
    %56 = vst [vmem:[#allocation2] sm:$0xff] %v55
    %v57 = vld [vmem:[#allocation3] sm:$0xff]
    %v58 = vadd.f32 %v47, %v48
    %v59 = vadd.f32 %v57, %v58
    %60 = vst [vmem:[#allocation3] sm:$0xff] %v59
    %v61 = vld [vmem:[#allocation4] sm:$0xff]
    %v62 = vadd.f32 %v49, %v50
    %v63 = vadd.f32 %v61, %v62
    %64 = vst [vmem:[#allocation4] sm:$0xff] %v63
    // Predicated region
    $region22: #{tpu_custom_call.1} parent=1 // pred_check
      %p65 = pneg %p40
    $region23: #{tpu_custom_call.1} parent=1 // pred_check_branch
      %67 = sbr.rel (%p65) target = $region25
    $region24: #{tpu_custom_call.1} parent=1 // pred_region
      %v68 = vld [vmem:[#allocation2] sm:$0xff]
      %69 = vadd.xlane.f32.xlu0 %v68
      %v70 = vpop.xlane.xlu0 %69
      %v71 = vrot.slane %v70, 4
      %v72 = vadd.f32 %v70, %v71
      %v73 = vrot.slane %v72, 2
      %v74 = vadd.f32 %v72, %v73
      %v75 = vrot.slane %v74, 1
      %v76 = vadd.f32 %v74, %v75
      %s77 = vtos %v76
      %s78 = scalar_lea.smem [#allocation10], 0
      %79 = sst [smem:[%s78]] %s77
      %v80 = vld [vmem:[#allocation3] sm:$0xff]
      %81 = vadd.xlane.f32.xlu0 %v80
      %v82 = vpop.xlane.xlu0 %81
      %v83 = vrot.slane %v82, 4
      %v84 = vadd.f32 %v82, %v83
      %v85 = vrot.slane %v84, 2
      %v86 = vadd.f32 %v84, %v85
      %v87 = vrot.slane %v86, 1
      %v88 = vadd.f32 %v86, %v87
      %s89 = vtos %v88
      %s90 = scalar_lea.smem [#allocation10], 1
      %91 = sst [smem:[%s90]] %s89
      %v92 = vld [vmem:[#allocation4] sm:$0xff]
      %93 = vadd.xlane.f32.xlu0 %v92
      %v94 = vpop.xlane.xlu0 %93
      %v95 = vrot.slane %v94, 4
      %v96 = vadd.f32 %v94, %v95
      %v97 = vrot.slane %v96, 2
      %v98 = vadd.f32 %v96, %v97
      %v99 = vrot.slane %v98, 1
      %v100 = vadd.f32 %v98, %v99
      %s101 = vtos %v100
      %s102 = scalar_lea.smem [#allocation10], 2
      %103 = sst [smem:[%s102]] %s101
    $region25: #{tpu_custom_call.1} parent=1 // pred_fallthru
      _
    // Predicated region
    $region26: #{tpu_custom_call.1} parent=1 // pred_check
      _
    $region27: #{tpu_custom_call.1} parent=1 // pred_check_branch
      %105 = sbr.rel (0) target = $region29
    $region28: #{tpu_custom_call.1} parent=1 // pred_region
      %s107 = ssub.s32 16, 16
      %108 = vsyncadd [#allocation7], %s107
      %111 = dma.smem_to_hbm [#allocation10], 16, %s2, [#allocation7]
    $region29: #{tpu_custom_call.1} parent=1 // pred_fallthru
      _
    // Predicated region
    $region30: #{tpu_custom_call.1} parent=1 // pred_check
      _
    $region31: #{tpu_custom_call.1} parent=1 // pred_check_branch
      %113 = sbr.rel (0) target = $region33
    $region32: #{tpu_custom_call.1} parent=1 // pred_region
      %114 = dma.done [#allocation7], 16
    $region33: #{tpu_custom_call.1} parent=1 // pred_fallthru
      _
    %115 = sfence
    %116 = vsyncpa [#allocation6], 1
    %117 = vsyncpa [#allocation9], 1
    %118 = vsyncpa [#allocation7], 1

</llo_original>
